<compile_context>
chip_gen: v5e
topology: v5e:2x2
jax: 0.10.0
libtpu: 0.0.40
codegen_flags: <defaults>
</compile_context>

<pallas_src>
import jax
import jax.numpy as jnp
import numpy as np
from jax.experimental import pallas as pl
from jax.experimental.pallas import tpu as pltpu

# Matmul input precision (review-requested).  Set to jnp.float32 for exact f32 semantics.
CONV_DTYPE = jnp.bfloat16


def _pick_tile(n, candidates=(1024, 512, 256, 128, 64, 32, 16, 8)):
    for t in candidates:
        if n % t == 0:
            return t
    return n


# ---------------- Pallas kernels ----------------

def conv_stats_kernel(x_ref, w_ref, y_ref, sum_ref, sq_ref):
    # x_ref: (TM, 9*Cin) bf16   w_ref: (9*Cin, Cp) bf16
    # y_ref: (TM, Cp) f32       sum_ref/sq_ref: (1, Cp) f32 accumulators (resident block)
    y = jnp.dot(x_ref[...], w_ref[...], preferred_element_type=jnp.float32)
    y_ref[...] = y

    @pl.when(pl.program_id(0) == 0)
    def _():
        sum_ref[...] = jnp.zeros_like(sum_ref)
        sq_ref[...] = jnp.zeros_like(sq_ref)

    sum_ref[...] += jnp.sum(y, axis=0, keepdims=True)
    sq_ref[...] += jnp.sum(y * y, axis=0, keepdims=True)


def bn_relu_pool_kernel(y_ref, scale_ref, shift_ref, o_ref):
    # y_ref: (4, 1, Hh, Wh, Cp) — leading dim = the 4 corners of each 2x2 pool window
    # scale/shift: (1, Cp)       o_ref: (1, Hh, Wh, Cp)
    s = scale_ref[...]
    b = shift_ref[...]
    z = jnp.maximum(y_ref[0, 0] * s + b, 0.0)
    for k in range(1, 4):  # static unroll over the 4 window corners (leading-dim indexing)
        z = jnp.maximum(z, jnp.maximum(y_ref[k, 0] * s + b, 0.0))
    o_ref[0] = z


def bn_relu_kernel(y_ref, scale_ref, shift_ref, o_ref):
    # pool=False path: y_ref/o_ref: (TM, Cp), scale/shift: (1, Cp)
    o_ref[...] = jnp.maximum(y_ref[...] * scale_ref[...] + shift_ref[...], 0.0)


# ---------------- wrapper ----------------

def basic_conv_block(x_nchw, weight_oihw, bias, gamma, beta, *, pool=True, eps=1e-5):
    del bias  # conv bias cancels exactly under training-mode BatchNorm (see header note)
    N, Cin, H, W = x_nchw.shape
    Cout = weight_oihw.shape[0]
    K = 9 * Cin
    M = N * H * W
    Cp = ((Cout + 127) // 128) * 128          # lane-pad channels to a multiple of 128

    # ---- XLA glue: layout + padding + im2col (built once, bf16) ----
    x_nhwc = jnp.transpose(x_nchw, (0, 2, 3, 1)).astype(CONV_DTYPE)
    xpad = jnp.pad(x_nhwc, ((0, 0), (1, 1), (1, 1), (0, 0)))
    cols = [xpad[:, dy:dy + H, dx:dx + W, :] for dy in range(3) for dx in range(3)]
    xi = jnp.concatenate(cols, axis=-1)        # (N, H, W, 9*Cin)
    # Further HBM saving possible: DMA the padded image per tile and build taps in VMEM.
    if pool:
        assert H % 2 == 0 and W % 2 == 0
        Hh, Wh = H // 2, W // 2
        # Reorder rows so the 4 pool-window corners become a leading dim of the conv output:
        # row order = (hp, wp, n, hh, wh) with (h, w) = (2*hh + hp, 2*wh + wp).
        xi = xi.reshape(N, Hh, 2, Wh, 2, K).transpose(2, 4, 0, 1, 3, 5)  # (2,2,N,Hh,Wh,K)
    xi = xi.reshape(M, K)

    w = jnp.transpose(weight_oihw, (2, 3, 1, 0)).reshape(K, Cout)
    w = jnp.pad(w, ((0, 0), (0, Cp - Cout))).astype(CONV_DTYPE)          # (K, Cp)

    # ---- kernel 1: conv as a single matmul per M-tile, fused batch statistics ----
    TM = _pick_tile(M)
    y, ysum, ysq = pl.pallas_call(
        conv_stats_kernel,
        out_shape=(jax.ShapeDtypeStruct((M, Cp), jnp.float32),
                   jax.ShapeDtypeStruct((1, Cp), jnp.float32),
                   jax.ShapeDtypeStruct((1, Cp), jnp.float32)),
        grid=(M // TM,),
        in_specs=[pl.BlockSpec((TM, K), lambda i: (i, 0)),
                  pl.BlockSpec((K, Cp), lambda i: (0, 0))],
        out_specs=(pl.BlockSpec((TM, Cp), lambda i: (i, 0)),
                   pl.BlockSpec((1, Cp), lambda i: (0, 0)),    # accumulator (resident)
                   pl.BlockSpec((1, Cp), lambda i: (0, 0))),   # accumulator (resident)
        compiler_params=pltpu.CompilerParams(
            dimension_semantics=("arbitrary",),                # stats accumulate over tiles
            vmem_limit_bytes=32 * 1024 * 1024),
    )(xi, w)

    # ---- BN affine parameters from batch stats (tiny (1, Cp) math; plain XLA) ----
    cnt = jnp.float32(M)
    mean = ysum / cnt
    # clamp guards fp cancellation in E[y^2] - E[y]^2 (can dip slightly negative)
    var = jnp.maximum(ysq / cnt - mean * mean, 0.0)
    invstd = jax.lax.rsqrt(var + eps)
    gp = jnp.pad(gamma.astype(jnp.float32), (0, Cp - Cout)).reshape(1, Cp)
    bp = jnp.pad(beta.astype(jnp.float32), (0, Cp - Cout)).reshape(1, Cp)
    scale = gp * invstd
    shift = bp - mean * scale

    # ---- kernel 2: fused BN-affine + ReLU (+ 2x2/stride-2 max pool), lane-dense ----
    if pool:
        y5 = y.reshape(4, N, Hh, Wh, Cp)       # leading-dim reshape only (layout no-op)
        out = pl.pallas_call(
            bn_relu_pool_kernel,
            out_shape=jax.ShapeDtypeStruct((N, Hh, Wh, Cp), jnp.float32),
            grid=(N,),
            in_specs=[pl.BlockSpec((4, 1, Hh, Wh, Cp), lambda n: (0, n, 0, 0, 0)),
                      pl.BlockSpec((1, Cp), lambda n: (0, 0)),
                      pl.BlockSpec((1, Cp), lambda n: (0, 0))],
            out_specs=pl.BlockSpec((1, Hh, Wh, Cp), lambda n: (n, 0, 0, 0)),
            compiler_params=pltpu.CompilerParams(dimension_semantics=("parallel",)),
        )(y5, scale, shift)
        return jnp.transpose(out[..., :Cout], (0, 3, 1, 2))   # NCHW
    else:
        TM2 = _pick_tile(M)
        z = pl.pallas_call(
            bn_relu_kernel,
            out_shape=jax.ShapeDtypeStruct((M, Cp), jnp.float32),
            grid=(M // TM2,),
            in_specs=[pl.BlockSpec((TM2, Cp), lambda i: (i, 0)),
                      pl.BlockSpec((1, Cp), lambda i: (0, 0)),
                      pl.BlockSpec((1, Cp), lambda i: (0, 0))],
            out_specs=pl.BlockSpec((TM2, Cp), lambda i: (i, 0)),
            compiler_params=pltpu.CompilerParams(dimension_semantics=("parallel",)),
        )(y, scale, shift)
        return jnp.transpose(z.reshape(N, H, W, Cp)[..., :Cout], (0, 3, 1, 2))


# ---------------- pure-JAX reference for verification ----------------

def reference(x_nchw, weight, bias, gamma, beta, *, pool=True, eps=1e-5,
              conv_dtype=CONV_DTYPE):
    # Mirrors the kernel's matmul precision (inputs rounded to conv_dtype, f32 accumulate).
    xq = x_nchw.astype(conv_dtype).astype(jnp.float32)
    wq = weight.astype(conv_dtype).astype(jnp.float32)
    y = jax.lax.conv_general_dilated(
        xq, wq, window_strides=(1, 1), padding=((1, 1), (1, 1)),
        dimension_numbers=('NCHW', 'OIHW', 'NCHW'))
    y = y + bias.reshape(1, -1, 1, 1)
    mean = jnp.mean(y, axis=(0, 2, 3), keepdims=True)
    var = jnp.mean((y - mean) ** 2, axis=(0, 2, 3), keepdims=True)
    y = (y - mean) * jax.lax.rsqrt(var + eps) * gamma.reshape(1, -1, 1, 1) \
        + beta.reshape(1, -1, 1, 1)
    y = jnp.maximum(y, 0.0)
    if pool:
        N, C, H, W = y.shape
        y = y.reshape(N, C, H // 2, 2, W // 2, 2).max(axis=(3, 5))
    return y


if __name__ == "__main__":
    key = jax.random.PRNGKey(0)
    kx, kw, kb = jax.random.split(key, 3)

    N, Cin, Cout, H, W = 2, 4, 8, 16, 16
    x = jax.random.normal(kx, (N, Cin, H, W), jnp.float32)

    # deterministic params (Conv2d kaiming-uniform-like bounds; fresh BN gamma=1, beta=0)
    bound = 1.0 / np.sqrt(Cin * 3 * 3)
    weight = jax.random.uniform(kw, (Cout, Cin, 3, 3), jnp.float32, -bound, bound)
    bias = jax.random.uniform(kb, (Cout,), jnp.float32, -bound, bound)
    gamma = jnp.ones((Cout,), jnp.float32)
    beta = jnp.zeros((Cout,), jnp.float32)

    # pool=True path
    out = jax.block_until_ready(basic_conv_block(x, weight, bias, gamma, beta, pool=True))
    ref = reference(x, weight, bias, gamma, beta, pool=True)
    assert out.shape == (N, Cout, H // 2, W // 2), out.shape
    np.testing.assert_allclose(np.asarray(out), np.asarray(ref), rtol=2e-3, atol=2e-3)

    # pool=False path (nn.Identity)
    out_np = jax.block_until_ready(basic_conv_block(x, weight, bias, gamma, beta, pool=False))
    ref_np = reference(x, weight, bias, gamma, beta, pool=False)
    assert out_np.shape == (N, Cout, H, W), out_np.shape
    np.testing.assert_allclose(np.asarray(out_np), np.asarray(ref_np), rtol=2e-3, atol=2e-3)

    print("KERNEL_OK")
</pallas_src>

<mosaic_0001>
module attributes {stable_mosaic.version = 11 : i64} {
  func.func @conv_stats_kernel(%arg0: i32, %arg1: memref<512x36xbf16, #tpu.memory_space<vmem>>, %arg2: memref<36x128xbf16, #tpu.memory_space<vmem>>, %arg3: memref<512x128xf32, #tpu.memory_space<vmem>>, %arg4: memref<1x128xf32, #tpu.memory_space<vmem>>, %arg5: memref<1x128xf32, #tpu.memory_space<vmem>>) attributes {dimension_semantics = [#tpu.dimension_semantics<arbitrary>], iteration_bounds = array<i64: 1>, scalar_prefetch = 0 : i64, scratch_operands = 0 : i64, tpu.core_type = #tpu.core_type<tc>, window_params = [{transform_indices = @transform_0, window_bounds = array<i64: 512, 36>}, {pipeline_mode = #tpu.pipeline_mode<synchronous>, transform_indices = @transform_1, window_bounds = array<i64: 36, 128>}, {transform_indices = @transform_2, window_bounds = array<i64: 512, 128>}, {pipeline_mode = #tpu.pipeline_mode<synchronous>, transform_indices = @transform_3, window_bounds = array<i64: 1, 128>}, {pipeline_mode = #tpu.pipeline_mode<synchronous>, transform_indices = @transform_4, window_bounds = array<i64: 1, 128>}]} {
    %c0 = arith.constant 0 : index
    %c0_0 = arith.constant 0 : index
    %0 = vector.load %arg1[%c0, %c0_0] : memref<512x36xbf16, #tpu.memory_space<vmem>>, vector<512x36xbf16>
    %c0_1 = arith.constant 0 : index
    %c0_2 = arith.constant 0 : index
    %1 = vector.load %arg2[%c0_1, %c0_2] : memref<36x128xbf16, #tpu.memory_space<vmem>>, vector<36x128xbf16>
    %cst = arith.constant dense<0.000000e+00> : vector<512x128xf32>
    %2 = tpu.matmul %0, %1, %cst {dimension_numbers = #tpu.dot_dimension_numbers<[1], [0], [0], [1], [0, 0, 1, 1], [], []>} : vector<512x36xbf16>, vector<36x128xbf16>, vector<512x128xf32> -> vector<512x128xf32>
    %c0_3 = arith.constant 0 : index
    %c0_4 = arith.constant 0 : index
    %3 = vector.load %arg3[%c0_3, %c0_4] : memref<512x128xf32, #tpu.memory_space<vmem>>, vector<512x128xf32>
    tpu.vector_store %arg3[%c0_3, %c0_4], %2 {strides = array<i32>} : memref<512x128xf32, #tpu.memory_space<vmem>>, vector<512x128xf32>,
    %c0_i32 = arith.constant 0 : i32
    %4 = arith.cmpi eq, %arg0, %c0_i32 : i32
    %5 = arith.extui %4 : i1 to i32
    %c0_i32_5 = arith.constant 0 : i32
    %6 = arith.cmpi ne, %5, %c0_i32_5 : i32
    scf.if %6 {
      %cst_16 = arith.constant 0.000000e+00 : f32
      %18 = vector.broadcast %cst_16 : f32 to vector<1x128xf32>
      %c0_17 = arith.constant 0 : index
      %c0_18 = arith.constant 0 : index
      %19 = vector.load %arg4[%c0_17, %c0_18] : memref<1x128xf32, #tpu.memory_space<vmem>>, vector<1x128xf32>
      tpu.vector_store %arg4[%c0_17, %c0_18], %18 {strides = array<i32>} : memref<1x128xf32, #tpu.memory_space<vmem>>, vector<1x128xf32>,
      %cst_19 = arith.constant 0.000000e+00 : f32
      %20 = vector.broadcast %cst_19 : f32 to vector<1x128xf32>
      %c0_20 = arith.constant 0 : index
      %c0_21 = arith.constant 0 : index
      %21 = vector.load %arg5[%c0_20, %c0_21] : memref<1x128xf32, #tpu.memory_space<vmem>>, vector<1x128xf32>
      tpu.vector_store %arg5[%c0_20, %c0_21], %20 {strides = array<i32>} : memref<1x128xf32, #tpu.memory_space<vmem>>, vector<1x128xf32>,
    } else {
    }
    %c0_6 = arith.constant 0 : index
    %c0_7 = arith.constant 0 : index
    %7 = vector.load %arg4[%c0_6, %c0_7] : memref<1x128xf32, #tpu.memory_space<vmem>>, vector<1x128xf32>
    %cst_8 = arith.constant dense<0.000000e+00> : vector<128xf32>
    %8 = vector.multi_reduction <add>, %2, %cst_8 [0] : vector<512x128xf32> to vector<128xf32>
    %9 = vector.shape_cast %8 : vector<128xf32> to vector<1x128xf32>
    %10 = arith.addf %7, %9 : vector<1x128xf32>
    %c0_9 = arith.constant 0 : index
    %c0_10 = arith.constant 0 : index
    %11 = vector.load %arg4[%c0_9, %c0_10] : memref<1x128xf32, #tpu.memory_space<vmem>>, vector<1x128xf32>
    tpu.vector_store %arg4[%c0_9, %c0_10], %10 {strides = array<i32>} : memref<1x128xf32, #tpu.memory_space<vmem>>, vector<1x128xf32>,
    %c0_11 = arith.constant 0 : index
    %c0_12 = arith.constant 0 : index
    %12 = vector.load %arg5[%c0_11, %c0_12] : memref<1x128xf32, #tpu.memory_space<vmem>>, vector<1x128xf32>
    %13 = arith.mulf %2, %2 : vector<512x128xf32>
    %cst_13 = arith.constant dense<0.000000e+00> : vector<128xf32>
    %14 = vector.multi_reduction <add>, %13, %cst_13 [0] : vector<512x128xf32> to vector<128xf32>
    %15 = vector.shape_cast %14 : vector<128xf32> to vector<1x128xf32>
    %16 = arith.addf %12, %15 : vector<1x128xf32>
    %c0_14 = arith.constant 0 : index
    %c0_15 = arith.constant 0 : index
    %17 = vector.load %arg5[%c0_14, %c0_15] : memref<1x128xf32, #tpu.memory_space<vmem>>, vector<1x128xf32>
    tpu.vector_store %arg5[%c0_14, %c0_15], %16 {strides = array<i32>} : memref<1x128xf32, #tpu.memory_space<vmem>>, vector<1x128xf32>,
    return
  }
  func.func @transform_0(%arg0: i32) -> (i32, i32) {
    %c0_i32 = arith.constant 0 : i32
    %c0_i32_0 = arith.constant 0 : i32
    return %arg0, %c0_i32 : i32, i32
  }
  func.func @transform_1(%arg0: i32) -> (i32, i32) {
    %c0_i32 = arith.constant 0 : i32
    %c0_i32_0 = arith.constant 0 : i32
    %c0_i32_1 = arith.constant 0 : i32
    return %c0_i32, %c0_i32_0 : i32, i32
  }
  func.func @transform_2(%arg0: i32) -> (i32, i32) {
    %c0_i32 = arith.constant 0 : i32
    %c0_i32_0 = arith.constant 0 : i32
    return %arg0, %c0_i32 : i32, i32
  }
  func.func @transform_3(%arg0: i32) -> (i32, i32) {
    %c0_i32 = arith.constant 0 : i32
    %c0_i32_0 = arith.constant 0 : i32
    %c0_i32_1 = arith.constant 0 : i32
    return %c0_i32, %c0_i32_0 : i32, i32
  }
  func.func @transform_4(%arg0: i32) -> (i32, i32) {
    %c0_i32 = arith.constant 0 : i32
    %c0_i32_0 = arith.constant 0 : i32
    %c0_i32_1 = arith.constant 0 : i32
    return %c0_i32, %c0_i32_0 : i32, i32
  }
}

</mosaic_0001>

<llo_original>
// kernel: tpu_custom_call.1
$region0: #{tpu_custom_call.1}
  #allocation0 [shape = 'u32[]', space=smem, size = 0x4, offset = 0x4, fixed_abs, tag = 'smem constant byte address 0x4 - core index']
  #allocation1 [shape = 'u32[72,128]{1,0:T(1,128)}', space=vmem, size = 0x9000, scoped, tag = 'internal scratch']
  %s0 = inlined_call_operand.vmem [shape: bf16[512,36], index: 0, kind: input, shape index: {}]
  %s1 = inlined_call_operand.vmem [shape: bf16[36,128], index: 1, kind: input, shape index: {}]
  %s2 = inlined_call_operand.hbm [shape: f32[512,128], index: 2, kind: output, shape index: {0}]
  %s3 = inlined_call_operand.hbm [shape: f32[1,128], index: 3, kind: output, shape index: {1}]
  %s4 = inlined_call_operand.hbm [shape: f32[1,128], index: 4, kind: output, shape index: {2}]
  %5 = xla_tuple %s2, %s3, %s4
  %s6 = sld [smem:[#allocation0]]
  $region38: #{tpu_custom_call.1} parent=0
    _
  %s8 = ssub.s32 1, %s6
  %s9 = scalar_select 0, %s8, %s6
  $region1: #{tpu_custom_call.1} parent=0
    #allocation2 [shape = 'u8[262144]{0}', space=vmem, size = 0x40000, scoped, tag = 'output window, operand 0, single buffered']
    #allocation3 [shape = 's32[1]{0}', space=sflag, size = 0x4, scoped, tag = 'scoped memory for tpu_custom_call.1']
    #allocation4 [shape = 'u8[512]{0}', space=vmem, size = 0x400, scoped, tag = 'output window, operand 1, single buffered']
    #allocation5 [shape = 's32[1]{0}', space=sflag, size = 0x4, scoped, tag = 'scoped memory for tpu_custom_call.1']
    #allocation6 [shape = 'u8[512]{0}', space=vmem, size = 0x400, scoped, tag = 'output window, operand 2, single buffered']
    %10 = vsyncpa [#allocation3], 0
    %11 = vsyncpa [#allocation5], 0
    // Predicated region
    $region2: #{tpu_custom_call.1} parent=1 // pred_check
      _
    $region3: #{tpu_custom_call.1} parent=1 // pred_check_branch
      %13 = sbr.rel (0) target = $region5
    $region4: #{tpu_custom_call.1} parent=1 // pred_region
      _
    $region5: #{tpu_custom_call.1} parent=1 // pred_fallthru
      _
    // Predicated region
    $region6: #{tpu_custom_call.1} parent=1 // pred_check
      _
    $region7: #{tpu_custom_call.1} parent=1 // pred_check_branch
      %15 = sbr.rel (0) target = $region9
    $region8: #{tpu_custom_call.1} parent=1 // pred_region
      _
    $region9: #{tpu_custom_call.1} parent=1 // pred_fallthru
      _
    %v17 = vld [vmem:[%s0] sm:$0xf]
    %v18 = vld [vmem:[%s0 + $0x4] sm:$0xf]
    %v19 = vld [vmem:[%s0 + $0x8] sm:$0xf]
    %v20 = vld [vmem:[%s0 + $0xc] sm:$0xf]
    %v21 = vld [vmem:[%s0 + $0x10] sm:$0xf]
    %v22 = vld [vmem:[%s0 + $0x14] sm:$0xf]
    %v23 = vld [vmem:[%s0 + $0x18] sm:$0xf]
    %v24 = vld [vmem:[%s0 + $0x1c] sm:$0xf]
    %v25 = vld [vmem:[%s0 + $0x20] sm:$0xf]
    %v26 = vld [vmem:[%s0 + $0x24] sm:$0xf]
    %v27 = vld [vmem:[%s0 + $0x28] sm:$0xf]
    %v28 = vld [vmem:[%s0 + $0x2c] sm:$0xf]
    %v29 = vld [vmem:[%s0 + $0x30] sm:$0xf]
    %v30 = vld [vmem:[%s0 + $0x34] sm:$0xf]
    %v31 = vld [vmem:[%s0 + $0x38] sm:$0xf]
    %v32 = vld [vmem:[%s0 + $0x3c] sm:$0xf]
    %v33 = vld [vmem:[%s0 + $0x40] sm:$0xf]
    %v34 = vld [vmem:[%s0 + $0x44] sm:$0xf]
    %v35 = vld [vmem:[%s0 + $0x48] sm:$0xf]
    %v36 = vld [vmem:[%s0 + $0x4c] sm:$0xf]
    %v37 = vld [vmem:[%s0 + $0x50] sm:$0xf]
    %v38 = vld [vmem:[%s0 + $0x54] sm:$0xf]
    %v39 = vld [vmem:[%s0 + $0x58] sm:$0xf]
    %v40 = vld [vmem:[%s0 + $0x5c] sm:$0xf]
    %v41 = vld [vmem:[%s0 + $0x60] sm:$0xf]
    %v42 = vld [vmem:[%s0 + $0x64] sm:$0xf]
    %v43 = vld [vmem:[%s0 + $0x68] sm:$0xf]
    %v44 = vld [vmem:[%s0 + $0x6c] sm:$0xf]
    %v45 = vld [vmem:[%s0 + $0x70] sm:$0xf]
    %v46 = vld [vmem:[%s0 + $0x74] sm:$0xf]
    %v47 = vld [vmem:[%s0 + $0x78] sm:$0xf]
    %v48 = vld [vmem:[%s0 + $0x7c] sm:$0xf]
    %v49 = vld [vmem:[%s0 + $0x80] sm:$0xf]
    %v50 = vld [vmem:[%s0 + $0x84] sm:$0xf]
    %v51 = vld [vmem:[%s0 + $0x88] sm:$0xf]
    %v52 = vld [vmem:[%s0 + $0x8c] sm:$0xf]
    %v53 = vld [vmem:[%s0 + $0x90] sm:$0xf]
    %v54 = vld [vmem:[%s0 + $0x94] sm:$0xf]
    %v55 = vld [vmem:[%s0 + $0x98] sm:$0xf]
    %v56 = vld [vmem:[%s0 + $0x9c] sm:$0xf]
    %v57 = vld [vmem:[%s0 + $0xa0] sm:$0xf]
    %v58 = vld [vmem:[%s0 + $0xa4] sm:$0xf]
    %v59 = vld [vmem:[%s0 + $0xa8] sm:$0xf]
    %v60 = vld [vmem:[%s0 + $0xac] sm:$0xf]
    %v61 = vld [vmem:[%s0 + $0xb0] sm:$0xf]
    %v62 = vld [vmem:[%s0 + $0xb4] sm:$0xf]
    %v63 = vld [vmem:[%s0 + $0xb8] sm:$0xf]
    %v64 = vld [vmem:[%s0 + $0xbc] sm:$0xf]
    %v65 = vld [vmem:[%s0 + $0xc0] sm:$0xf]
    %v66 = vld [vmem:[%s0 + $0xc4] sm:$0xf]
    %v67 = vld [vmem:[%s0 + $0xc8] sm:$0xf]
    %v68 = vld [vmem:[%s0 + $0xcc] sm:$0xf]
    %v69 = vld [vmem:[%s0 + $0xd0] sm:$0xf]
    %v70 = vld [vmem:[%s0 + $0xd4] sm:$0xf]
    %v71 = vld [vmem:[%s0 + $0xd8] sm:$0xf]
    %v72 = vld [vmem:[%s0 + $0xdc] sm:$0xf]
    %v73 = vld [vmem:[%s0 + $0xe0] sm:$0xf]
    %v74 = vld [vmem:[%s0 + $0xe4] sm:$0xf]
    %v75 = vld [vmem:[%s0 + $0xe8] sm:$0xf]
    %v76 = vld [vmem:[%s0 + $0xec] sm:$0xf]
    %v77 = vld [vmem:[%s0 + $0xf0] sm:$0xf]
    %v78 = vld [vmem:[%s0 + $0xf4] sm:$0xf]
    %v79 = vld [vmem:[%s0 + $0xf8] sm:$0xf]
    %v80 = vld [vmem:[%s0 + $0xfc] sm:$0xf]
    %v81 = vld [vmem:[%s1] sm:$0xf]
    %v82 = vld [vmem:[%s1 + $0x4] sm:$0xf]
    %v83 = vld [vmem:[%s1 + $0x8] sm:$0xf]
    %v84 = vld [vmem:[%s1 + $0xc] sm:$0xf]
    %v85 = vld [vmem:[%s1 + $0x10] sm:$0x3]
    %v150 = vunpack.c.l.b16 %v17
    %v151 = vunpack.c.l.b16 %v18
    %v152 = vunpack.c.l.b16 %v19
    %v153 = vunpack.c.l.b16 %v20
    %v154 = vunpack.c.l.b16 %v21
    %v155 = vunpack.c.l.b16 %v22
    %v156 = vunpack.c.l.b16 %v23
    %v157 = vunpack.c.l.b16 %v24
    %v158 = vunpack.c.l.b16 %v25
    %v159 = vunpack.c.l.b16 %v26
    %v160 = vunpack.c.l.b16 %v27
    %v161 = vunpack.c.l.b16 %v28
    %v162 = vunpack.c.l.b16 %v29
    %v163 = vunpack.c.l.b16 %v30
    %v164 = vunpack.c.l.b16 %v31
    %v165 = vunpack.c.l.b16 %v32
    %v166 = vunpack.c.l.b16 %v33
    %v167 = vunpack.c.l.b16 %v34
    %v168 = vunpack.c.l.b16 %v35
    %v169 = vunpack.c.l.b16 %v36
    %v170 = vunpack.c.l.b16 %v37
    %v171 = vunpack.c.l.b16 %v38
    %v172 = vunpack.c.l.b16 %v39
    %v173 = vunpack.c.l.b16 %v40
    %v174 = vunpack.c.l.b16 %v41
    %v175 = vunpack.c.l.b16 %v42
    %v176 = vunpack.c.l.b16 %v43
    %v177 = vunpack.c.l.b16 %v44
    %v178 = vunpack.c.l.b16 %v45
    %v179 = vunpack.c.l.b16 %v46
    %v180 = vunpack.c.l.b16 %v47
    %v181 = vunpack.c.l.b16 %v48
    %v182 = vunpack.c.l.b16 %v49
    %v183 = vunpack.c.l.b16 %v50
    %v184 = vunpack.c.l.b16 %v51
    %v185 = vunpack.c.l.b16 %v52
    %v186 = vunpack.c.l.b16 %v53
    %v187 = vunpack.c.l.b16 %v54
    %v188 = vunpack.c.l.b16 %v55
    %v189 = vunpack.c.l.b16 %v56
    %v190 = vunpack.c.l.b16 %v57
    %v191 = vunpack.c.l.b16 %v58
    %v192 = vunpack.c.l.b16 %v59
    %v193 = vunpack.c.l.b16 %v60
    %v194 = vunpack.c.l.b16 %v61
    %v195 = vunpack.c.l.b16 %v62
    %v196 = vunpack.c.l.b16 %v63
    %v197 = vunpack.c.l.b16 %v64
    %v198 = vunpack.c.l.b16 %v65
    %v199 = vunpack.c.l.b16 %v66
    %v200 = vunpack.c.l.b16 %v67
    %v201 = vunpack.c.l.b16 %v68
    %v202 = vunpack.c.l.b16 %v69
    %v203 = vunpack.c.l.b16 %v70
    %v204 = vunpack.c.l.b16 %v71
    %v205 = vunpack.c.l.b16 %v72
    %v206 = vunpack.c.l.b16 %v73
    %v207 = vunpack.c.l.b16 %v74
    %v208 = vunpack.c.l.b16 %v75
    %v209 = vunpack.c.l.b16 %v76
    %v210 = vunpack.c.l.b16 %v77
    %v211 = vunpack.c.l.b16 %v78
    %v212 = vunpack.c.l.b16 %v79
    %v213 = vunpack.c.l.b16 %v80
    %v214 = vpack.c.b16 %v151, %v150
    %v215 = vpack.c.b16 %v153, %v152
    %v216 = vpack.c.b16 %v155, %v154
    %v217 = vpack.c.b16 %v157, %v156
    %v218 = vpack.c.b16 %v159, %v158
    %v219 = vpack.c.b16 %v161, %v160
    %v220 = vpack.c.b16 %v163, %v162
    %v221 = vpack.c.b16 %v165, %v164
    %v222 = vpack.c.b16 %v167, %v166
    %v223 = vpack.c.b16 %v169, %v168
    %v224 = vpack.c.b16 %v171, %v170
    %v225 = vpack.c.b16 %v173, %v172
    %v226 = vpack.c.b16 %v175, %v174
    %v227 = vpack.c.b16 %v177, %v176
    %v228 = vpack.c.b16 %v179, %v178
    %v229 = vpack.c.b16 %v181, %v180
    %v230 = vpack.c.b16 %v183, %v182
    %v231 = vpack.c.b16 %v185, %v184
    %v232 = vpack.c.b16 %v187, %v186
    %v233 = vpack.c.b16 %v189, %v188
    %v234 = vpack.c.b16 %v191, %v190
    %v235 = vpack.c.b16 %v193, %v192
    %v236 = vpack.c.b16 %v195, %v194
    %v237 = vpack.c.b16 %v197, %v196
    %v238 = vpack.c.b16 %v199, %v198
    %v239 = vpack.c.b16 %v201, %v200
    %v240 = vpack.c.b16 %v203, %v202
    %v241 = vpack.c.b16 %v205, %v204
    %v242 = vpack.c.b16 %v207, %v206
    %v243 = vpack.c.b16 %v209, %v208
    %v244 = vpack.c.b16 %v211, %v210
    %v245 = vpack.c.b16 %v213, %v212
    %v251 = vunpack.c.l.b16 %v81
    %v252 = vunpack.c.l.b16 %v82
    %v253 = vunpack.c.l.b16 %v83
    %v254 = vunpack.c.l.b16 %v84
    %v255 = vunpack.c.l.b16 %v85
    %v256 = vpack.c.b16 %v252, %v251
    %v257 = vpack.c.b16 %v254, %v253
    %v258 = vpack.c.b16 %v255, %v255
    %vm261 = vcmask 293888
    %v263 = vsel %vm261, %v214, 0
    %v266 = vsel %vm261, %v215, 0
    %v269 = vsel %vm261, %v216, 0
    %v272 = vsel %vm261, %v217, 0
    %v275 = vsel %vm261, %v218, 0
    %v278 = vsel %vm261, %v219, 0
    %v281 = vsel %vm261, %v220, 0
    %v284 = vsel %vm261, %v221, 0
    %v287 = vsel %vm261, %v222, 0
    %v290 = vsel %vm261, %v223, 0
    %v293 = vsel %vm261, %v224, 0
    %v296 = vsel %vm261, %v225, 0
    %v299 = vsel %vm261, %v226, 0
    %v302 = vsel %vm261, %v227, 0
    %v305 = vsel %vm261, %v228, 0
    %v308 = vsel %vm261, %v229, 0
    %v311 = vsel %vm261, %v230, 0
    %v314 = vsel %vm261, %v231, 0
    %v317 = vsel %vm261, %v232, 0
    %v320 = vsel %vm261, %v233, 0
    %v323 = vsel %vm261, %v234, 0
    %v326 = vsel %vm261, %v235, 0
    %v329 = vsel %vm261, %v236, 0
    %v332 = vsel %vm261, %v237, 0
    %v335 = vsel %vm261, %v238, 0
    %v338 = vsel %vm261, %v239, 0
    %v341 = vsel %vm261, %v240, 0
    %v344 = vsel %vm261, %v241, 0
    %v347 = vsel %vm261, %v242, 0
    %v350 = vsel %vm261, %v243, 0
    %v353 = vsel %vm261, %v244, 0
    %v356 = vsel %vm261, %v245, 0
    %vm358 = vcmask 1041408
    %v360 = vsel %vm358, %v258, 0
    %362 = vmatpush.bf16.msra.mxu0 0
    %363 = vmatpush.bf16.msra.mxu0 0
    %364 = vmatpush.bf16.msra.mxu0 0
    %365 = vmatpush.bf16.msra.mxu0 0
    %366 = vmatpush.bf16.msra.mxu0 0
    %367 = vmatpush.bf16.msra.mxu0 %v360
    %368 = vmatpush.bf16.msra.mxu0 %v257
    %369 = vmatpush.bf16.msra.mxu0 %v256
    %370 = vmatmul.bf16.gmra.mxu0 %v263
    %v371 = vpop.f32.mrf.mxu0
    %v372 = vadd.f32 0.0, %v371
    %v373 = vpop.f32.mrf.mxu0
    %v374 = vadd.f32 0.0, %v373
    %375 = vmatmul.bf16.gmra.mxu0 %v266
    %v376 = vpop.f32.mrf.mxu0
    %v377 = vadd.f32 0.0, %v376
    %v378 = vpop.f32.mrf.mxu0
    %v379 = vadd.f32 0.0, %v378
    %380 = vmatmul.bf16.gmra.mxu0 %v269
    %v381 = vpop.f32.mrf.mxu0
    %v382 = vadd.f32 0.0, %v381
    %v383 = vpop.f32.mrf.mxu0
    %v384 = vadd.f32 0.0, %v383
    %385 = vmatmul.bf16.gmra.mxu0 %v272
    %v386 = vpop.f32.mrf.mxu0
    %v387 = vadd.f32 0.0, %v386
    %v388 = vpop.f32.mrf.mxu0
    %v389 = vadd.f32 0.0, %v388
    %390 = vmatmul.bf16.gmra.mxu0 %v275
    %v391 = vpop.f32.mrf.mxu0
    %v392 = vadd.f32 0.0, %v391
    %v393 = vpop.f32.mrf.mxu0
    %v394 = vadd.f32 0.0, %v393
    %395 = vmatmul.bf16.gmra.mxu0 %v278
    %v396 = vpop.f32.mrf.mxu0
    %v397 = vadd.f32 0.0, %v396
    %v398 = vpop.f32.mrf.mxu0
    %v399 = vadd.f32 0.0, %v398
    %400 = vmatmul.bf16.gmra.mxu0 %v281
    %v401 = vpop.f32.mrf.mxu0
    %v402 = vadd.f32 0.0, %v401
    %v403 = vpop.f32.mrf.mxu0
    %v404 = vadd.f32 0.0, %v403
    %405 = vmatmul.bf16.gmra.mxu0 %v284
    %v406 = vpop.f32.mrf.mxu0
    %v407 = vadd.f32 0.0, %v406
    %v408 = vpop.f32.mrf.mxu0
    %v409 = vadd.f32 0.0, %v408
    %410 = vmatmul.bf16.gmra.mxu0 %v287
    %v411 = vpop.f32.mrf.mxu0
    %v412 = vadd.f32 0.0, %v411
    %v413 = vpop.f32.mrf.mxu0
    %v414 = vadd.f32 0.0, %v413
    %415 = vmatmul.bf16.gmra.mxu0 %v290
    %v416 = vpop.f32.mrf.mxu0
    %v417 = vadd.f32 0.0, %v416
    %v418 = vpop.f32.mrf.mxu0
    %v419 = vadd.f32 0.0, %v418
    %420 = vmatmul.bf16.gmra.mxu0 %v293
    %v421 = vpop.f32.mrf.mxu0
    %v422 = vadd.f32 0.0, %v421
    %v423 = vpop.f32.mrf.mxu0
    %v424 = vadd.f32 0.0, %v423
    %425 = vmatmul.bf16.gmra.mxu0 %v296
    %v426 = vpop.f32.mrf.mxu0
    %v427 = vadd.f32 0.0, %v426
    %v428 = vpop.f32.mrf.mxu0
    %v429 = vadd.f32 0.0, %v428
    %430 = vmatmul.bf16.gmra.mxu0 %v299
    %v431 = vpop.f32.mrf.mxu0
    %v432 = vadd.f32 0.0, %v431
    %v433 = vpop.f32.mrf.mxu0
    %v434 = vadd.f32 0.0, %v433
    %435 = vmatmul.bf16.gmra.mxu0 %v302
    %v436 = vpop.f32.mrf.mxu0
    %v437 = vadd.f32 0.0, %v436
    %v438 = vpop.f32.mrf.mxu0
    %v439 = vadd.f32 0.0, %v438
    %440 = vmatmul.bf16.gmra.mxu0 %v305
    %v441 = vpop.f32.mrf.mxu0
    %v442 = vadd.f32 0.0, %v441
    %v443 = vpop.f32.mrf.mxu0
    %v444 = vadd.f32 0.0, %v443
    %445 = vmatmul.bf16.gmra.mxu0 %v308
    %v446 = vpop.f32.mrf.mxu0
    %v447 = vadd.f32 0.0, %v446
    %v448 = vpop.f32.mrf.mxu0
    %v449 = vadd.f32 0.0, %v448
    %450 = vmatmul.bf16.gmra.mxu0 %v311
    %v451 = vpop.f32.mrf.mxu0
    %v452 = vadd.f32 0.0, %v451
    %v453 = vpop.f32.mrf.mxu0
    %v454 = vadd.f32 0.0, %v453
    %455 = vmatmul.bf16.gmra.mxu0 %v314
    %v456 = vpop.f32.mrf.mxu0
    %v457 = vadd.f32 0.0, %v456
    %v458 = vpop.f32.mrf.mxu0
    %v459 = vadd.f32 0.0, %v458
    %460 = vmatmul.bf16.gmra.mxu0 %v317
    %v461 = vpop.f32.mrf.mxu0
    %v462 = vadd.f32 0.0, %v461
    %v463 = vpop.f32.mrf.mxu0
    %v464 = vadd.f32 0.0, %v463
    %465 = vmatmul.bf16.gmra.mxu0 %v320
    %v466 = vpop.f32.mrf.mxu0
    %v467 = vadd.f32 0.0, %v466
    %v468 = vpop.f32.mrf.mxu0
    %v469 = vadd.f32 0.0, %v468
    %470 = vmatmul.bf16.gmra.mxu0 %v323
    %v471 = vpop.f32.mrf.mxu0
    %v472 = vadd.f32 0.0, %v471
    %v473 = vpop.f32.mrf.mxu0
    %v474 = vadd.f32 0.0, %v473
    %475 = vmatmul.bf16.gmra.mxu0 %v326
    %v476 = vpop.f32.mrf.mxu0
    %v477 = vadd.f32 0.0, %v476
    %v478 = vpop.f32.mrf.mxu0
    %v479 = vadd.f32 0.0, %v478
    %480 = vmatmul.bf16.gmra.mxu0 %v329
    %v481 = vpop.f32.mrf.mxu0
    %v482 = vadd.f32 0.0, %v481
    %v483 = vpop.f32.mrf.mxu0
    %v484 = vadd.f32 0.0, %v483
    %485 = vmatmul.bf16.gmra.mxu0 %v332
    %v486 = vpop.f32.mrf.mxu0
    %v487 = vadd.f32 0.0, %v486
    %v488 = vpop.f32.mrf.mxu0
    %v489 = vadd.f32 0.0, %v488
    %490 = vmatmul.bf16.gmra.mxu0 %v335
    %v491 = vpop.f32.mrf.mxu0
    %v492 = vadd.f32 0.0, %v491
    %v493 = vpop.f32.mrf.mxu0
    %v494 = vadd.f32 0.0, %v493
    %495 = vmatmul.bf16.gmra.mxu0 %v338
    %v496 = vpop.f32.mrf.mxu0
    %v497 = vadd.f32 0.0, %v496
    %v498 = vpop.f32.mrf.mxu0
    %v499 = vadd.f32 0.0, %v498
    %500 = vmatmul.bf16.gmra.mxu0 %v341
    %v501 = vpop.f32.mrf.mxu0
    %v502 = vadd.f32 0.0, %v501
    %v503 = vpop.f32.mrf.mxu0
    %v504 = vadd.f32 0.0, %v503
    %505 = vmatmul.bf16.gmra.mxu0 %v344
    %v506 = vpop.f32.mrf.mxu0
    %v507 = vadd.f32 0.0, %v506
    %v508 = vpop.f32.mrf.mxu0
    %v509 = vadd.f32 0.0, %v508
    %510 = vmatmul.bf16.gmra.mxu0 %v347
    %v511 = vpop.f32.mrf.mxu0
    %v512 = vadd.f32 0.0, %v511
    %v513 = vpop.f32.mrf.mxu0
    %v514 = vadd.f32 0.0, %v513
    %515 = vmatmul.bf16.gmra.mxu0 %v350
    %v516 = vpop.f32.mrf.mxu0
    %v517 = vadd.f32 0.0, %v516
    %v518 = vpop.f32.mrf.mxu0
    %v519 = vadd.f32 0.0, %v518
    %520 = vmatmul.bf16.gmra.mxu0 %v353
    %v521 = vpop.f32.mrf.mxu0
    %v522 = vadd.f32 0.0, %v521
    %v523 = vpop.f32.mrf.mxu0
    %v524 = vadd.f32 0.0, %v523
    %525 = vmatmul.bf16.gmra.mxu0 %v356
    %v526 = vpop.f32.mrf.mxu0
    %v527 = vadd.f32 0.0, %v526
    %v528 = vpop.f32.mrf.mxu0
    %v529 = vadd.f32 0.0, %v528
    %530 = vdwg.mxu0
    %531 = vst [vmem:[#allocation2] sm:$0xff] %v372
    %532 = vst [vmem:[#allocation2 + $0x8] sm:$0xff] %v374
    %533 = vst [vmem:[#allocation2 + $0x10] sm:$0xff] %v377
    %534 = vst [vmem:[#allocation2 + $0x18] sm:$0xff] %v379
    %535 = vst [vmem:[#allocation2 + $0x20] sm:$0xff] %v382
    %536 = vst [vmem:[#allocation2 + $0x28] sm:$0xff] %v384
    %537 = vst [vmem:[#allocation2 + $0x30] sm:$0xff] %v387
    %538 = vst [vmem:[#allocation2 + $0x38] sm:$0xff] %v389
    %539 = vst [vmem:[#allocation2 + $0x40] sm:$0xff] %v392
    %540 = vst [vmem:[#allocation2 + $0x48] sm:$0xff] %v394
    %541 = vst [vmem:[#allocation2 + $0x50] sm:$0xff] %v397
    %542 = vst [vmem:[#allocation2 + $0x58] sm:$0xff] %v399
    %543 = vst [vmem:[#allocation2 + $0x60] sm:$0xff] %v402
    %544 = vst [vmem:[#allocation2 + $0x68] sm:$0xff] %v404
    %545 = vst [vmem:[#allocation2 + $0x70] sm:$0xff] %v407
    %546 = vst [vmem:[#allocation2 + $0x78] sm:$0xff] %v409
    %547 = vst [vmem:[#allocation2 + $0x80] sm:$0xff] %v412
    %548 = vst [vmem:[#allocation2 + $0x88] sm:$0xff] %v414
    %549 = vst [vmem:[#allocation2 + $0x90] sm:$0xff] %v417
    %550 = vst [vmem:[#allocation2 + $0x98] sm:$0xff] %v419
    %551 = vst [vmem:[#allocation2 + $0xa0] sm:$0xff] %v422
    %552 = vst [vmem:[#allocation2 + $0xa8] sm:$0xff] %v424
    %553 = vst [vmem:[#allocation2 + $0xb0] sm:$0xff] %v427
    %554 = vst [vmem:[#allocation2 + $0xb8] sm:$0xff] %v429
    %555 = vst [vmem:[#allocation2 + $0xc0] sm:$0xff] %v432
    %556 = vst [vmem:[#allocation2 + $0xc8] sm:$0xff] %v434
    %557 = vst [vmem:[#allocation2 + $0xd0] sm:$0xff] %v437
    %558 = vst [vmem:[#allocation2 + $0xd8] sm:$0xff] %v439
    %559 = vst [vmem:[#allocation2 + $0xe0] sm:$0xff] %v442
    %560 = vst [vmem:[#allocation2 + $0xe8] sm:$0xff] %v444
    %561 = vst [vmem:[#allocation2 + $0xf0] sm:$0xff] %v447
    %562 = vst [vmem:[#allocation2 + $0xf8] sm:$0xff] %v449
    %563 = vst [vmem:[#allocation2 + $0x100] sm:$0xff] %v452
    %564 = vst [vmem:[#allocation2 + $0x108] sm:$0xff] %v454
    %565 = vst [vmem:[#allocation2 + $0x110] sm:$0xff] %v457
    %566 = vst [vmem:[#allocation2 + $0x118] sm:$0xff] %v459
    %567 = vst [vmem:[#allocation2 + $0x120] sm:$0xff] %v462
    %568 = vst [vmem:[#allocation2 + $0x128] sm:$0xff] %v464
    %569 = vst [vmem:[#allocation2 + $0x130] sm:$0xff] %v467
    %570 = vst [vmem:[#allocation2 + $0x138] sm:$0xff] %v469
    %571 = vst [vmem:[#allocation2 + $0x140] sm:$0xff] %v472
    %572 = vst [vmem:[#allocation2 + $0x148] sm:$0xff] %v474
    %573 = vst [vmem:[#allocation2 + $0x150] sm:$0xff] %v477
    %574 = vst [vmem:[#allocation2 + $0x158] sm:$0xff] %v479
    %575 = vst [vmem:[#allocation2 + $0x160] sm:$0xff] %v482
    %576 = vst [vmem:[#allocation2 + $0x168] sm:$0xff] %v484
    %577 = vst [vmem:[#allocation2 + $0x170] sm:$0xff] %v487
    %578 = vst [vmem:[#allocation2 + $0x178] sm:$0xff] %v489
    %579 = vst [vmem:[#allocation2 + $0x180] sm:$0xff] %v492
    %580 = vst [vmem:[#allocation2 + $0x188] sm:$0xff] %v494
    %581 = vst [vmem:[#allocation2 + $0x190] sm:$0xff] %v497
    %582 = vst [vmem:[#allocation2 + $0x198] sm:$0xff] %v499
    %583 = vst [vmem:[#allocation2 + $0x1a0] sm:$0xff] %v502
    %584 = vst [vmem:[#allocation2 + $0x1a8] sm:$0xff] %v504
    %585 = vst [vmem:[#allocation2 + $0x1b0] sm:$0xff] %v507
    %586 = vst [vmem:[#allocation2 + $0x1b8] sm:$0xff] %v509
    %587 = vst [vmem:[#allocation2 + $0x1c0] sm:$0xff] %v512
    %588 = vst [vmem:[#allocation2 + $0x1c8] sm:$0xff] %v514
    %589 = vst [vmem:[#allocation2 + $0x1d0] sm:$0xff] %v517
    %590 = vst [vmem:[#allocation2 + $0x1d8] sm:$0xff] %v519
    %591 = vst [vmem:[#allocation2 + $0x1e0] sm:$0xff] %v522
    %592 = vst [vmem:[#allocation2 + $0x1e8] sm:$0xff] %v524
    %593 = vst [vmem:[#allocation2 + $0x1f0] sm:$0xff] %v527
    %594 = vst [vmem:[#allocation2 + $0x1f8] sm:$0xff] %v529
    %p595 = scmp.eq.s32.totalorder 0, 0
    // Predicated region
    $region10: #{tpu_custom_call.1} parent=1 // pred_check
      %p596 = pneg %p595
    $region11: #{tpu_custom_call.1} parent=1 // pred_check_branch
      %598 = sbr.rel (%p596) target = $region13
    $region12: #{tpu_custom_call.1} parent=1 // pred_region
      %599 = vst [vmem:[#allocation4] sm:$0x1] 0.0
      %600 = vst [vmem:[#allocation6] sm:$0x1] 0.0
    $region13: #{tpu_custom_call.1} parent=1 // pred_fallthru
      _
    %v601 = vld [vmem:[#allocation4] sm:$0x1]
    %v602 = vadd.f32 %v372, %v374
    %v603 = vadd.f32 %v602, %v377
    %v604 = vadd.f32 %v603, %v379
    %v605 = vadd.f32 %v604, %v382
    %v606 = vadd.f32 %v605, %v384
    %v607 = vadd.f32 %v606, %v387
    %v608 = vadd.f32 %v607, %v389
    %v609 = vadd.f32 %v608, %v392
    %v610 = vadd.f32 %v609, %v394
    %v611 = vadd.f32 %v610, %v397
    %v612 = vadd.f32 %v611, %v399
    %v613 = vadd.f32 %v612, %v402
    %v614 = vadd.f32 %v613, %v404
    %v615 = vadd.f32 %v614, %v407
    %v616 = vadd.f32 %v615, %v409
    %v617 = vadd.f32 %v616, %v412
    %v618 = vadd.f32 %v617, %v414
    %v619 = vadd.f32 %v618, %v417
    %v620 = vadd.f32 %v619, %v419
    %v621 = vadd.f32 %v620, %v422
    %v622 = vadd.f32 %v621, %v424
    %v623 = vadd.f32 %v622, %v427
    %v624 = vadd.f32 %v623, %v429
    %v625 = vadd.f32 %v624, %v432
    %v626 = vadd.f32 %v625, %v434
    %v627 = vadd.f32 %v626, %v437
    %v628 = vadd.f32 %v627, %v439
    %v629 = vadd.f32 %v628, %v442
    %v630 = vadd.f32 %v629, %v444
    %v631 = vadd.f32 %v630, %v447
    %v632 = vadd.f32 %v631, %v449
    %v633 = vadd.f32 %v632, %v452
    %v634 = vadd.f32 %v633, %v454
    %v635 = vadd.f32 %v634, %v457
    %v636 = vadd.f32 %v635, %v459
    %v637 = vadd.f32 %v636, %v462
    %v638 = vadd.f32 %v637, %v464
    %v639 = vadd.f32 %v638, %v467
    %v640 = vadd.f32 %v639, %v469
    %v641 = vadd.f32 %v640, %v472
    %v642 = vadd.f32 %v641, %v474
    %v643 = vadd.f32 %v642, %v477
    %v644 = vadd.f32 %v643, %v479
    %v645 = vadd.f32 %v644, %v482
    %v646 = vadd.f32 %v645, %v484
    %v647 = vadd.f32 %v646, %v487
    %v648 = vadd.f32 %v647, %v489
    %v649 = vadd.f32 %v648, %v492
    %v650 = vadd.f32 %v649, %v494
    %v651 = vadd.f32 %v650, %v497
    %v652 = vadd.f32 %v651, %v499
    %v653 = vadd.f32 %v652, %v502
    %v654 = vadd.f32 %v653, %v504
    %v655 = vadd.f32 %v654, %v507
    %v656 = vadd.f32 %v655, %v509
    %v657 = vadd.f32 %v656, %v512
    %v658 = vadd.f32 %v657, %v514
    %v659 = vadd.f32 %v658, %v517
    %v660 = vadd.f32 %v659, %v519
    %v661 = vadd.f32 %v660, %v522
    %v662 = vadd.f32 %v661, %v524
    %v663 = vadd.f32 %v662, %v527
    %v664 = vadd.f32 %v663, %v529
    %v665 = vrot.slane %v664, 4
    %v666 = vadd.f32 %v664, %v665
    %v667 = vrot.slane %v666, 2
    %v668 = vadd.f32 %v666, %v667
    %v669 = vrot.slane %v668, 1
    %v670 = vadd.f32 %v668, %v669
    %v671 = vadd.f32 %v601, %v670
    %672 = vst [vmem:[#allocation4] sm:$0x1] %v671
    %v673 = vld [vmem:[#allocation6] sm:$0x1]
    %v674 = vmul.f32 %v372, %v372
    %v675 = vmul.f32 %v374, %v374
    %v676 = vmul.f32 %v377, %v377
    %v677 = vmul.f32 %v379, %v379
    %v678 = vmul.f32 %v382, %v382
    %v679 = vmul.f32 %v384, %v384
    %v680 = vmul.f32 %v387, %v387
    %v681 = vmul.f32 %v389, %v389
    %v682 = vmul.f32 %v392, %v392
    %v683 = vmul.f32 %v394, %v394
    %v684 = vmul.f32 %v397, %v397
    %v685 = vmul.f32 %v399, %v399
    %v686 = vmul.f32 %v402, %v402
    %v687 = vmul.f32 %v404, %v404
    %v688 = vmul.f32 %v407, %v407
    %v689 = vmul.f32 %v409, %v409
    %v690 = vmul.f32 %v412, %v412
    %v691 = vmul.f32 %v414, %v414
    %v692 = vmul.f32 %v417, %v417
    %v693 = vmul.f32 %v419, %v419
    %v694 = vmul.f32 %v422, %v422
    %v695 = vmul.f32 %v424, %v424
    %v696 = vmul.f32 %v427, %v427
    %v697 = vmul.f32 %v429, %v429
    %v698 = vmul.f32 %v432, %v432
    %v699 = vmul.f32 %v434, %v434
    %v700 = vmul.f32 %v437, %v437
    %v701 = vmul.f32 %v439, %v439
    %v702 = vmul.f32 %v442, %v442
    %v703 = vmul.f32 %v444, %v444
    %v704 = vmul.f32 %v447, %v447
    %v705 = vmul.f32 %v449, %v449
    %v706 = vmul.f32 %v452, %v452
    %v707 = vmul.f32 %v454, %v454
    %v708 = vmul.f32 %v457, %v457
    %v709 = vmul.f32 %v459, %v459
    %v710 = vmul.f32 %v462, %v462
    %v711 = vmul.f32 %v464, %v464
    %v712 = vmul.f32 %v467, %v467
    %v713 = vmul.f32 %v469, %v469
    %v714 = vmul.f32 %v472, %v472
    %v715 = vmul.f32 %v474, %v474
    %v716 = vmul.f32 %v477, %v477
    %v717 = vmul.f32 %v479, %v479
    %v718 = vmul.f32 %v482, %v482
    %v719 = vmul.f32 %v484, %v484
    %v720 = vmul.f32 %v487, %v487
    %v721 = vmul.f32 %v489, %v489
    %v722 = vmul.f32 %v492, %v492
    %v723 = vmul.f32 %v494, %v494
    %v724 = vmul.f32 %v497, %v497
    %v725 = vmul.f32 %v499, %v499
    %v726 = vmul.f32 %v502, %v502
    %v727 = vmul.f32 %v504, %v504
    %v728 = vmul.f32 %v507, %v507
    %v729 = vmul.f32 %v509, %v509
    %v730 = vmul.f32 %v512, %v512
    %v731 = vmul.f32 %v514, %v514
    %v732 = vmul.f32 %v517, %v517
    %v733 = vmul.f32 %v519, %v519
    %v734 = vmul.f32 %v522, %v522
    %v735 = vmul.f32 %v524, %v524
    %v736 = vmul.f32 %v527, %v527
    %v737 = vmul.f32 %v529, %v529
    %v738 = vadd.f32 %v674, %v675
    %v739 = vadd.f32 %v738, %v676
    %v740 = vadd.f32 %v739, %v677
    %v741 = vadd.f32 %v740, %v678
    %v742 = vadd.f32 %v741, %v679
    %v743 = vadd.f32 %v742, %v680
    %v744 = vadd.f32 %v743, %v681
    %v745 = vadd.f32 %v744, %v682
    %v746 = vadd.f32 %v745, %v683
    %v747 = vadd.f32 %v746, %v684
    %v748 = vadd.f32 %v747, %v685
    %v749 = vadd.f32 %v748, %v686
    %v750 = vadd.f32 %v749, %v687
    %v751 = vadd.f32 %v750, %v688
    %v752 = vadd.f32 %v751, %v689
    %v753 = vadd.f32 %v752, %v690
    %v754 = vadd.f32 %v753, %v691
    %v755 = vadd.f32 %v754, %v692
    %v756 = vadd.f32 %v755, %v693
    %v757 = vadd.f32 %v756, %v694
    %v758 = vadd.f32 %v757, %v695
    %v759 = vadd.f32 %v758, %v696
    %v760 = vadd.f32 %v759, %v697
    %v761 = vadd.f32 %v760, %v698
    %v762 = vadd.f32 %v761, %v699
    %v763 = vadd.f32 %v762, %v700
    %v764 = vadd.f32 %v763, %v701
    %v765 = vadd.f32 %v764, %v702
    %v766 = vadd.f32 %v765, %v703
    %v767 = vadd.f32 %v766, %v704
    %v768 = vadd.f32 %v767, %v705
    %v769 = vadd.f32 %v768, %v706
    %v770 = vadd.f32 %v769, %v707
    %v771 = vadd.f32 %v770, %v708
    %v772 = vadd.f32 %v771, %v709
    %v773 = vadd.f32 %v772, %v710
    %v774 = vadd.f32 %v773, %v711
    %v775 = vadd.f32 %v774, %v712
    %v776 = vadd.f32 %v775, %v713
    %v777 = vadd.f32 %v776, %v714
    %v778 = vadd.f32 %v777, %v715
    %v779 = vadd.f32 %v778, %v716
    %v780 = vadd.f32 %v779, %v717
    %v781 = vadd.f32 %v780, %v718
    %v782 = vadd.f32 %v781, %v719
    %v783 = vadd.f32 %v782, %v720
    %v784 = vadd.f32 %v783, %v721
    %v785 = vadd.f32 %v784, %v722
    %v786 = vadd.f32 %v785, %v723
    %v787 = vadd.f32 %v786, %v724
    %v788 = vadd.f32 %v787, %v725
    %v789 = vadd.f32 %v788, %v726
    %v790 = vadd.f32 %v789, %v727
    %v791 = vadd.f32 %v790, %v728
    %v792 = vadd.f32 %v791, %v729
    %v793 = vadd.f32 %v792, %v730
    %v794 = vadd.f32 %v793, %v731
    %v795 = vadd.f32 %v794, %v732
    %v796 = vadd.f32 %v795, %v733
    %v797 = vadd.f32 %v796, %v734
    %v798 = vadd.f32 %v797, %v735
    %v799 = vadd.f32 %v798, %v736
    %v800 = vadd.f32 %v799, %v737
    %v801 = vrot.slane %v800, 4
    %v802 = vadd.f32 %v800, %v801
    %v803 = vrot.slane %v802, 2
    %v804 = vadd.f32 %v802, %v803
    %v805 = vrot.slane %v804, 1
    %v806 = vadd.f32 %v804, %v805
    %v807 = vadd.f32 %v673, %v806
    %808 = vst [vmem:[#allocation6] sm:$0x1] %v807
    // Predicated region
    $region14: #{tpu_custom_call.1} parent=1 // pred_check
      _
    $region15: #{tpu_custom_call.1} parent=1 // pred_check_branch
      %810 = sbr.rel (0) target = $region17
    $region16: #{tpu_custom_call.1} parent=1 // pred_region
      %812 = vsyncadd [#allocation3], 0
      %s813 = sshll.u32 [#allocation2], 4
      %s814 = int_to_ptr.vmem [resolvable:$true] %s813
      %s815 = sshll.u32 %s2, 4
      %s816 = int_to_ptr.hbm [resolvable:$true] %s815
      %821 = dma.vmem_to_hbm [thread:$0]  %s814, 8192, %s816, [#allocation3], 128, 128, 8
    $region17: #{tpu_custom_call.1} parent=1 // pred_fallthru
      _
    // Predicated region
    $region18: #{tpu_custom_call.1} parent=1 // pred_check
      _
    $region19: #{tpu_custom_call.1} parent=1 // pred_check_branch
      %823 = sbr.rel (0) target = $region21
    $region20: #{tpu_custom_call.1} parent=1 // pred_region
      %825 = vsyncadd [#allocation5], 0
      %s827 = sshll.u32 [#allocation4], 4
      %s828 = int_to_ptr.vmem [resolvable:$true] %s827
      %s829 = sshll.u32 %s3, 4
      %s830 = int_to_ptr.hbm [resolvable:$true] %s829
      %832 = dma.vmem_to_hbm [thread:$0]  %s828, 16, %s830, [#allocation5]
    $region21: #{tpu_custom_call.1} parent=1 // pred_fallthru
      _
    // Predicated region
    $region22: #{tpu_custom_call.1} parent=1 // pred_check
      _
    $region23: #{tpu_custom_call.1} parent=1 // pred_check_branch
      %834 = sbr.rel (0) target = $region25
    $region24: #{tpu_custom_call.1} parent=1 // pred_region
      %836 = vsyncadd [#allocation5], 0
      %s838 = sshll.u32 [#allocation6], 4
      %s839 = int_to_ptr.vmem [resolvable:$true] %s838
      %s840 = sshll.u32 %s4, 4
      %s841 = int_to_ptr.hbm [resolvable:$true] %s840
      %843 = dma.vmem_to_hbm [thread:$0]  %s839, 16, %s841, [#allocation5]
    $region25: #{tpu_custom_call.1} parent=1 // pred_fallthru
      _
    // Predicated region
    $region26: #{tpu_custom_call.1} parent=1 // pred_check
      _
    $region27: #{tpu_custom_call.1} parent=1 // pred_check_branch
      %845 = sbr.rel (0) target = $region29
    $region28: #{tpu_custom_call.1} parent=1 // pred_region
      %847 = dma.done [#allocation3], 8192
    $region29: #{tpu_custom_call.1} parent=1 // pred_fallthru
      _
    // Predicated region
    $region30: #{tpu_custom_call.1} parent=1 // pred_check
      _
    $region31: #{tpu_custom_call.1} parent=1 // pred_check_branch
      %849 = sbr.rel (0) target = $region33
    $region32: #{tpu_custom_call.1} parent=1 // pred_region
      %851 = dma.done [#allocation5], 16
    $region33: #{tpu_custom_call.1} parent=1 // pred_fallthru
      _
    // Predicated region
    $region34: #{tpu_custom_call.1} parent=1 // pred_check
      _
    $region35: #{tpu_custom_call.1} parent=1 // pred_check_branch
      %853 = sbr.rel (0) target = $region37
    $region36: #{tpu_custom_call.1} parent=1 // pred_region
      %855 = dma.done [#allocation5], 16
    $region37: #{tpu_custom_call.1} parent=1 // pred_fallthru
      _
    %856 = vsyncpa [#allocation3], 1
    %857 = vsyncpa [#allocation5], 1

</llo_original>
